<compile_context>
chip_gen: v7x
topology: tpu7x:2x2x1
jax: 0.10.0
libtpu: 0.0.40
codegen_flags: <defaults>
</compile_context>

<pallas_src>
import functools

import jax
import jax.numpy as jnp
from jax.experimental import pallas as pl
from jax.experimental.pallas import tpu as pltpu


_LANE = 128
_TARGET_TILE_BYTES = 4 * 1024 * 1024       # per input, per pipeline buffer


def _vmem_capacity_bytes():
    """Best-effort VMEM capacity query; conservative fallback (v7x per-TC)."""
    try:
        return int(pltpu.get_tpu_info().vmem_capacity_bytes)
    except Exception:
        return 64 * 1024 * 1024


def _vmem_input_budget():
    # 2 inputs x 2 pipeline buffers share ~25% of VMEM: ~32 MiB on v5e/v6e,
    # ~16 MiB on v7x.
    return max(8 * 1024 * 1024, _vmem_capacity_bytes() // 4)


def _small_input_threshold():
    # Below this total-byte count, pallas_call launch + grid-step overhead
    # beats the DMA time; XLA's fused elementwise+reduce wins.  v7x's 3.2 TB/s
    # HBM (detected via its 64 MiB/TC VMEM) pushes the crossover up.
    # TODO(synk): benchmark the exact crossover per generation.
    return (8 << 20) if _vmem_capacity_bytes() <= (64 << 20) else (4 << 20)


def _batch_dim_semantics():
    # v7x (and megacore chips) have >1 TensorCore; CORE_PARALLEL shards the
    # independent batch tiles across them.  Detection is best-effort and falls
    # back to the always-safe "parallel" (codegen-neutral on single-TC chips).
    cores = 1
    try:
        info = pltpu.get_tpu_info()
        for name in ("num_cores", "num_tensorcores", "tensorcores_per_chip",
                     "core_count"):
            v = getattr(info, name, None)
            if isinstance(v, int) and v > cores:
                cores = v
    except Exception:
        pass
    try:
        v = getattr(jax.devices()[0], "num_cores", None)
        if isinstance(v, int) and v > cores:
            cores = v
    except Exception:
        pass
    return pltpu.CORE_PARALLEL if cores > 1 else "parallel"


def _pick_batch_tile(b, d, itemsize, vmem_budget):
    """Byte-targeted batch tile: ~_TARGET_TILE_BYTES per input per buffer."""
    bytes_per_row = d * itemsize
    tb_target = max(8, _TARGET_TILE_BYTES // bytes_per_row)
    tb_cap = max(8, vmem_budget // (4 * bytes_per_row))   # 2 inputs x 2 bufs
    tb = min(tb_target, tb_cap)
    if tb >= b:
        return b                                           # one full block
    return max(8, (tb // 8) * 8)                           # 8-sublane multiple


def _l2_dist_kernel(x_ref, y_ref, o_ref):
    # (TB, d) tiles arrive in storage dtype (bf16 stays bf16 in VMEM);
    # upcast in-register, diff/square on the VPU, lane-reduce per row.
    x = x_ref[...].astype(jnp.float32)
    y = y_ref[...].astype(jnp.float32)
    diff = x - y
    o_ref[...] = jnp.sqrt(jnp.sum(diff * diff, axis=1, keepdims=True))


def _l2_dist_packed_kernel(d, g, x_ref, y_ref, o_ref):
    # Packed small-d path: each VMEM row holds g original rows of width d
    # (g*d = 128 lanes).  Group sums use static lane slices + concat, which
    # avoids an in-kernel 3-D reshape (lowering-fragile) and stays exact f32.
    x = x_ref[...].astype(jnp.float32)
    y = y_ref[...].astype(jnp.float32)
    diff = x - y
    sq = diff * diff                                       # (TB, g*d)
    parts = [jnp.sum(sq[:, j * d:(j + 1) * d], axis=1, keepdims=True)
             for j in range(g)]
    o_ref[...] = jnp.sqrt(jnp.concatenate(parts, axis=1))  # (TB, g)


def _l2_dist_pallas(x, y, tb_override=None):
    b, d = x.shape
    itemsize = x.dtype.itemsize
    vmem_budget = _vmem_input_budget()

    # Small-d lane packing: fold g = 128//d rows into one 128-lane packed row
    # so HBM->VMEM DMA and VPU work are lane-dense (d=32 would otherwise waste
    # 4x lanes/VMEM).  Wrapper reshape of a contiguous array is free.
    g = 1
    if 8 <= d < _LANE and _LANE % d == 0 and b % (_LANE // d) == 0:
        g = _LANE // d

    if g > 1:
        bp, dp = b // g, g * d
        xk = x.reshape(bp, dp)
        yk = y.reshape(bp, dp)
        kernel = functools.partial(_l2_dist_packed_kernel, d, g)
        out_cols = g
    else:
        bp, dp = b, d
        xk, yk = x, y
        kernel = _l2_dist_kernel
        out_cols = 1

    if tb_override is not None:
        tb = min(int(tb_override), bp)
    else:
        tb = _pick_batch_tile(bp, dp, itemsize, vmem_budget)

    cost = pl.CostEstimate(
        flops=3 * b * d,                                   # sub, mul, add-reduce
        transcendentals=b,                                 # sqrt per row
        bytes_accessed=2 * b * d * itemsize + 4 * b,
    )

    out = pl.pallas_call(
        kernel,
        out_shape=jax.ShapeDtypeStruct((bp, out_cols), jnp.float32),
        grid_spec=pltpu.PrefetchScalarGridSpec(
            num_scalar_prefetch=0,
            grid=(pl.cdiv(bp, tb),),
            in_specs=[
                pl.BlockSpec((tb, dp), lambda i: (i, 0)),
                pl.BlockSpec((tb, dp), lambda i: (i, 0)),
            ],
            out_specs=pl.BlockSpec((tb, out_cols), lambda i: (i, 0)),
        ),
        compiler_params=pltpu.CompilerParams(
            dimension_semantics=(_batch_dim_semantics(),),
            vmem_limit_bytes=int(vmem_budget + (8 << 20)),
        ),
        cost_estimate=cost,
    )(xk, yk)

    if g > 1:
        return out.reshape(b)                              # row-major unpack
    return out[:, 0]                                       # (b,)


def _validate_inputs(x, y, dim=None):
    """Mirror Metric._validate_inputs semantics for JAX arrays."""
    x = jnp.asarray(x)
    y = jnp.asarray(y)
    if x.ndim == 1 and y.ndim == 1:
        x = x[None, :]
        y = y[None, :]
    assert x.ndim == 2 and y.ndim == 2
    assert x.shape[1] == y.shape[1]
    if dim is not None:
        assert x.shape[1] == dim
    return x, y


def metric_forward(x, y, dim=None, use_pallas=None):
    """Metric.forward: validate (b, d) inputs, return per-row L2 distance (b,)."""
    x, y = _validate_inputs(x, y, dim=dim)

    # Common storage dtype; bf16/f16 stay narrow (halves HBM traffic); only
    # non-float inputs get promoted to f32 before the kernel.
    dtype = jnp.promote_types(x.dtype, y.dtype)
    if not jnp.issubdtype(dtype, jnp.floating):
        dtype = jnp.float32
    x = x.astype(dtype)
    y = y.astype(dtype)

    b, d = x.shape
    total_bytes = 2 * b * d * jnp.dtype(dtype).itemsize
    if use_pallas is None:
        use_pallas = total_bytes >= _small_input_threshold()
    if not use_pallas:
        diff = x.astype(jnp.float32) - y.astype(jnp.float32)
        return jnp.sqrt(jnp.sum(diff * diff, axis=1))
    return _l2_dist_pallas(x, y)


if __name__ == "__main__":
    keys = jax.random.split(jax.random.PRNGKey(0), 6)

    # 1) Small embedding batch consistent with the module; d=32 < 128 takes
    #    the lane-packing path ((8,32) -> packed (2,128)).
    b1, d1 = 8, 32
    x1 = jax.random.normal(keys[0], (b1, d1), dtype=jnp.float32)
    y1 = jax.random.normal(keys[1], (b1, d1), dtype=jnp.float32)
    out1 = metric_forward(x1, y1, use_pallas=True)
    jax.block_until_ready(out1)
    ref1 = jnp.sqrt(jnp.sum((x1 - y1) ** 2, axis=1))
    assert out1.shape == (b1,)
    assert jnp.allclose(out1, ref1, atol=1e-4, rtol=1e-4)

    # 2) bf16 inputs stay narrow in VMEM; forced Pallas, single full block.
    b2, d2 = 512, 256
    x2 = jax.random.normal(keys[2], (b2, d2), dtype=jnp.bfloat16)
    y2 = jax.random.normal(keys[3], (b2, d2), dtype=jnp.bfloat16)
    out2 = metric_forward(x2, y2, use_pallas=True)
    jax.block_until_ready(out2)
    diff2 = x2.astype(jnp.float32) - y2.astype(jnp.float32)
    ref2 = jnp.sqrt(jnp.sum(diff2 * diff2, axis=1))
    assert out2.shape == (b2,)
    assert jnp.allclose(out2, ref2, atol=1e-4, rtol=1e-4)

    # 3) Multi-tile pipeline with a masked partial edge block (tb override).
    b3, d3 = 520, 256
    x3 = jax.random.normal(keys[4], (b3, d3), dtype=jnp.float32)
    y3 = jax.random.normal(keys[5], (b3, d3), dtype=jnp.float32)
    out3 = _l2_dist_pallas(x3, y3, tb_override=128)
    jax.block_until_ready(out3)
    ref3 = jnp.sqrt(jnp.sum((x3 - y3) ** 2, axis=1))
    assert out3.shape == (b3,)
    assert jnp.allclose(out3, ref3, atol=1e-4, rtol=1e-4)

    # 4) Tiny inputs auto-dispatch to plain JAX (launch overhead >> data).
    out4 = metric_forward(x1, y1)
    jax.block_until_ready(out4)
    assert jnp.allclose(out4, ref1, atol=1e-4, rtol=1e-4)

    print("KERNEL_OK")
</pallas_src>

<mosaic_0001>
module attributes {stable_mosaic.version = 11 : i64} {
  func.func @_l2_dist_packed_kernel(%arg0: i32, %arg1: memref<2x128xf32, #tpu.memory_space<vmem>>, %arg2: memref<2x128xf32, #tpu.memory_space<vmem>>, %arg3: memref<2x4xf32, #tpu.memory_space<vmem>>) attributes {dimension_semantics = [#tpu.dimension_semantics<parallel>], iteration_bounds = array<i64: 1>, scalar_prefetch = 0 : i64, scratch_operands = 0 : i64, tpu.core_type = #tpu.core_type<tc>, window_params = [{transform_indices = @transform_0, window_bounds = array<i64: 2, 128>}, {transform_indices = @transform_1, window_bounds = array<i64: 2, 128>}, {transform_indices = @transform_2, window_bounds = array<i64: 2, 4>}]} {
    %c0 = arith.constant 0 : index
    %c0_0 = arith.constant 0 : index
    %0 = vector.load %arg1[%c0, %c0_0] : memref<2x128xf32, #tpu.memory_space<vmem>>, vector<2x128xf32>
    %c0_1 = arith.constant 0 : index
    %c0_2 = arith.constant 0 : index
    %1 = vector.load %arg2[%c0_1, %c0_2] : memref<2x128xf32, #tpu.memory_space<vmem>>, vector<2x128xf32>
    %2 = arith.subf %0, %1 : vector<2x128xf32>
    %3 = arith.mulf %2, %2 : vector<2x128xf32>
    %4 = vector.extract_strided_slice %3 {offsets = [0, 0], sizes = [2, 32], strides = [1, 1]} : vector<2x128xf32> to vector<2x32xf32>
    %cst = arith.constant dense<0.000000e+00> : vector<2xf32>
    %5 = vector.multi_reduction <add>, %4, %cst [1] : vector<2x32xf32> to vector<2xf32>
    %6 = vector.shape_cast %5 : vector<2xf32> to vector<2x1xf32>
    %7 = vector.extract_strided_slice %3 {offsets = [0, 32], sizes = [2, 32], strides = [1, 1]} : vector<2x128xf32> to vector<2x32xf32>
    %cst_3 = arith.constant dense<0.000000e+00> : vector<2xf32>
    %8 = vector.multi_reduction <add>, %7, %cst_3 [1] : vector<2x32xf32> to vector<2xf32>
    %9 = vector.shape_cast %8 : vector<2xf32> to vector<2x1xf32>
    %10 = vector.extract_strided_slice %3 {offsets = [0, 64], sizes = [2, 32], strides = [1, 1]} : vector<2x128xf32> to vector<2x32xf32>
    %cst_4 = arith.constant dense<0.000000e+00> : vector<2xf32>
    %11 = vector.multi_reduction <add>, %10, %cst_4 [1] : vector<2x32xf32> to vector<2xf32>
    %12 = vector.shape_cast %11 : vector<2xf32> to vector<2x1xf32>
    %13 = vector.extract_strided_slice %3 {offsets = [0, 96], sizes = [2, 32], strides = [1, 1]} : vector<2x128xf32> to vector<2x32xf32>
    %cst_5 = arith.constant dense<0.000000e+00> : vector<2xf32>
    %14 = vector.multi_reduction <add>, %13, %cst_5 [1] : vector<2x32xf32> to vector<2xf32>
    %15 = vector.shape_cast %14 : vector<2xf32> to vector<2x1xf32>
    %16 = tpu.concatenate %6, %9, %12, %15 in 1 : vector<2x1xf32>, vector<2x1xf32>, vector<2x1xf32>, vector<2x1xf32> -> vector<2x4xf32>
    %17 = math.sqrt %16 : vector<2x4xf32>
    %c0_6 = arith.constant 0 : index
    %c0_7 = arith.constant 0 : index
    %18 = vector.load %arg3[%c0_6, %c0_7] : memref<2x4xf32, #tpu.memory_space<vmem>>, vector<2x4xf32>
    tpu.vector_store %arg3[%c0_6, %c0_7], %17 {strides = array<i32>} : memref<2x4xf32, #tpu.memory_space<vmem>>, vector<2x4xf32>,
    return
  }
  func.func @transform_0(%arg0: i32) -> (i32, i32) {
    %c0_i32 = arith.constant 0 : i32
    %c0_i32_0 = arith.constant 0 : i32
    return %arg0, %c0_i32 : i32, i32
  }
  func.func @transform_1(%arg0: i32) -> (i32, i32) {
    %c0_i32 = arith.constant 0 : i32
    %c0_i32_0 = arith.constant 0 : i32
    return %arg0, %c0_i32 : i32, i32
  }
  func.func @transform_2(%arg0: i32) -> (i32, i32) {
    %c0_i32 = arith.constant 0 : i32
    %c0_i32_0 = arith.constant 0 : i32
    return %arg0, %c0_i32 : i32, i32
  }
}

</mosaic_0001>

<llo_original>
// kernel: tpu_custom_call.1
$region0: #{tpu_custom_call.1}
  #allocation0 [shape = 'u32[]', space=smem, size = 0x4, offset = 0x4, fixed_abs, tag = 'smem constant byte address 0x4 - core index']
  #allocation1 [shape = 'u32[144,128]{1,0:T(1,128)}', space=vmem, size = 0x12000, scoped, tag = 'internal scratch']
  %s0 = inlined_call_operand.hbm [shape: f32[2,128], index: 0, kind: input, shape index: {}]
  %s1 = inlined_call_operand.vmem [shape: f32[2,128], index: 1, kind: input, shape index: {}]
  %s2 = inlined_call_operand.hbm [shape: f32[2,4], index: 2, kind: output, shape index: {}]
  %s3 = sld [smem:[#allocation0]]
  $region22: #{tpu_custom_call.1} parent=0
    _
  %s5 = ssub.s32 1, %s3
  %s6 = scalar_select 0, %s5, %s3
  $region1: #{tpu_custom_call.1} parent=0
    #allocation2 [shape = 'u8[1024]{0}', space=vmem, size = 0x400, scoped, tag = 'input window, operand 0, single buffered']
    #allocation3 [shape = 's32[1]{0}', space=sflag, size = 0x4, scoped, tag = 'scoped memory for tpu_custom_call.1']
    #allocation4 [shape = 's32[1]{0}', space=sflag, size = 0x4, scoped, tag = 'scoped memory for tpu_custom_call.1']
    #allocation5 [shape = 'u8[1024]{0}', space=vmem, size = 0x400, scoped, tag = 'output window, operand 0, single buffered']
    %7 = vsyncpa [#allocation3], 0
    %8 = vsyncpa [#allocation4], 0
    // Predicated region
    $region2: #{tpu_custom_call.1} parent=1 // pred_check
      _
    $region3: #{tpu_custom_call.1} parent=1 // pred_check_branch
      %10 = sbr.rel (0) target = $region5
    $region4: #{tpu_custom_call.1} parent=1 // pred_region
      %s12 = ssub.s32 32, 32
      %13 = vsyncadd [#allocation3], %s12
      %s15 = sshll.u32 [#allocation2], 4
      %s16 = int_to_ptr.vmem [resolvable:$true] %s15
      %18 = dma.hbm_to_vmem [thread:$0]  %s0, 32, %s16, [#allocation3]
    $region5: #{tpu_custom_call.1} parent=1 // pred_fallthru
      _
    // Predicated region
    $region6: #{tpu_custom_call.1} parent=1 // pred_check
      _
    $region7: #{tpu_custom_call.1} parent=1 // pred_check_branch
      %20 = sbr.rel (0) target = $region9
    $region8: #{tpu_custom_call.1} parent=1 // pred_region
      _
    $region9: #{tpu_custom_call.1} parent=1 // pred_fallthru
      _
    // Predicated region
    $region10: #{tpu_custom_call.1} parent=1 // pred_check
      _
    $region11: #{tpu_custom_call.1} parent=1 // pred_check_branch
      %22 = sbr.rel (0) target = $region13
    $region12: #{tpu_custom_call.1} parent=1 // pred_region
      %23 = dma.done [#allocation3], 32
    $region13: #{tpu_custom_call.1} parent=1 // pred_fallthru
      _
    %v24 = vld [vmem:[#allocation2] sm:$0x3]
    %v25 = vld [vmem:[%s1] sm:$0x3]
    %v26 = vsub.f32 %v24, %v25
    %v27 = vmul.f32 %v26, %v26
    %vm28 = vcmask 254976
    %v29 = vsel %vm28, %v27, 0.0
    %30 = vadd.xlane.f32.xlu0 %v29
    %v31 = vpop.xlane.xlu0 %30
    %33 = vrot.lane.b32.xlu0 %v27, 96
    %v34 = vpop.permute.xlu0 %33
    %v36 = vsel %vm28, %v34, 0.0
    %37 = vadd.xlane.f32.xlu0 %v36
    %v38 = vpop.xlane.xlu0 %37
    %39 = vrot.lane.b32.xlu0 %v27, 64
    %v40 = vpop.permute.xlu0 %39
    %v42 = vsel %vm28, %v40, 0.0
    %43 = vadd.xlane.f32.xlu0 %v42
    %v44 = vpop.xlane.xlu0 %43
    %45 = vrot.lane.b32.xlu0 %v27, 32
    %v46 = vpop.permute.xlu0 %45
    %v48 = vsel %vm28, %v46, 0.0
    %49 = vadd.xlane.f32.xlu0 %v48
    %v50 = vpop.xlane.xlu0 %49
    %vm51 = vcmask 7168
    %v52 = vsel %vm51, %v31, %v38
    %vm53 = vcmask 15360
    %v54 = vsel %vm53, %v52, %v44
    %vm55 = vcmask 23552
    %v56 = vsel %vm55, %v54, %v50
    %v57 = vrsqrt.pop %v56
    %v58 = vmul.f32 %v56, %v57
    %vm59 = vcmp.eq.f32.partialorder %v56, inf
    %v60 = vsel %vm59, %v56, %v58
    %vm61 = vcmp.eq.f32.partialorder %v56, 0.0
    %v62 = vand.u32 %v56, 2147483648
    %v63 = vsel %vm61, %v62, %v60
    %vm64 = vcmask 25600
    %65 = vst.msk [vmem:[#allocation5] sm:$0x3] %vm64, %v63
    // Predicated region
    $region14: #{tpu_custom_call.1} parent=1 // pred_check
      _
    $region15: #{tpu_custom_call.1} parent=1 // pred_check_branch
      %67 = sbr.rel (0) target = $region17
    $region16: #{tpu_custom_call.1} parent=1 // pred_region
      %s69 = ssub.s32 32, 32
      %70 = vsyncadd [#allocation4], %s69
      %s72 = sshll.u32 [#allocation5], 4
      %s73 = int_to_ptr.vmem [resolvable:$true] %s72
      %75 = dma.vmem_to_hbm [thread:$0]  %s73, 32, %s2, [#allocation4]
    $region17: #{tpu_custom_call.1} parent=1 // pred_fallthru
      _
    // Predicated region
    $region18: #{tpu_custom_call.1} parent=1 // pred_check
      _
    $region19: #{tpu_custom_call.1} parent=1 // pred_check_branch
      %77 = sbr.rel (0) target = $region21
    $region20: #{tpu_custom_call.1} parent=1 // pred_region
      %78 = dma.done [#allocation4], 32
    $region21: #{tpu_custom_call.1} parent=1 // pred_fallthru
      _
    %79 = vsyncpa [#allocation3], 1
    %80 = vsyncpa [#allocation4], 1

</llo_original>
